<compile_context>
chip_gen: v5e
topology: v5e:2x2
jax: 0.10.0
libtpu: 0.0.40
codegen_flags: <defaults>
</compile_context>

<pallas_src>
import jax
import jax.numpy as jnp
from jax.experimental import pallas as pl
from jax.experimental.pallas import tpu as pltpu


def _round_up(x, m):
    return (x + m - 1) // m * m


def _make_kernel(compute_dtype):
    def kernel(s_ref, a_ref, w1_ref, b1_ref, w2_ref, b2_ref, w3_ref, b3_ref,
               o_ref, xcat_ref):
        # Shapes (Hp = hidden padded to 128, TB = batch tile, K = S + A):
        #   s_ref:[TB,S]  a_ref:[TB,A]     xcat_ref:[TB,K] (VMEM scratch)
        #   w1_ref:[Hp,K]  b1_ref:[Hp,1]
        #   w2_ref:[Hp,Hp] b2_ref:[Hp,1]
        #   w3_ref:[Hp,1]  b3_ref:(1,) in SMEM
        #   o_ref:[1,TB]   (lane-dense output row)
        cd = compute_dtype
        S = s_ref.shape[1]
        A = a_ref.shape[1]

        # Fused torch.cat: one [TB, S+A] slab -> layer 1 is a single MXU pass.
        xcat_ref[:, 0:S] = s_ref[...].astype(cd)
        xcat_ref[:, S:S + A] = a_ref[...].astype(cd)
        x = xcat_ref[...]

        # layer 1: h1^T = W1^T @ x^T  (contract last dims; batch stays on lanes)
        h1 = jax.lax.dot_general(
            w1_ref[...], x, (((1,), (1,)), ((), ())),
            preferred_element_type=jnp.float32) + b1_ref[...]
        h1 = jnp.maximum(h1, 0.0)                                  # f32 ReLU

        # layer 2: h2^T = W2^T @ h1^T + b2
        h2 = jnp.dot(w2_ref[...], h1.astype(cd),
                     preferred_element_type=jnp.float32) + b2_ref[...]
        h2 = jnp.maximum(h2, 0.0)

        # layer 3 (N=1): VPU multiply + sublane reduce, no MXU pass.
        q = jnp.sum(h2 * w3_ref[...], axis=0, keepdims=True) + b3_ref[0]
        o_ref[...] = q.astype(o_ref.dtype)

    return kernel


def prepare_params(params, compute_dtype=jnp.float32):
    """One-time prep: transpose all weights (activations live as [Hp, TB] in
    the kernel), keep fc1 pre-concatenated over (state, action), and zero-pad
    hidden 64 -> 128 lanes.  Padding keeps the math exactly identical.
    compute_dtype=jnp.bfloat16 is fine on v5e/v6e/v7x (bias/ReLU/head stay f32;
    bf16 weights are quantized once here, so results are not bit-exact vs f32)."""
    w1, b1, w2, b2, w3, b3 = params
    K, H = w1.shape                      # K = state_dim + action_dim
    Hp = _round_up(H, 128)

    w1cat = jnp.zeros((Hp, K), jnp.float32).at[:H, :].set(w1.T)   # [Hp, S+A]
    b1c = jnp.zeros((Hp, 1), jnp.float32).at[:H, 0].set(b1.reshape(-1))
    w2T = jnp.zeros((Hp, Hp), jnp.float32).at[:H, :H].set(w2.T)
    b2c = jnp.zeros((Hp, 1), jnp.float32).at[:H, 0].set(b2.reshape(-1))
    w3c = jnp.zeros((Hp, 1), jnp.float32).at[:H, 0].set(w3.reshape(-1))
    b3s = b3.reshape((1,)).astype(jnp.float32)

    return (w1cat.astype(compute_dtype), b1c,
            w2T.astype(compute_dtype), b2c, w3c, b3s)


def soft_q_forward(state, action, prepped, *, block_b=2048,
                   compute_dtype=jnp.float32):
    """state: [B, S], action: [B, A] -> q: [B, 1].  No input padding copies."""
    w1cat, b1c, w2T, b2c, w3c, b3s = prepped
    B, S = state.shape
    A = action.shape[1]
    Hp = w2T.shape[0]
    K = S + A

    # Batch tile: multiple of 128 (lane-dense output stores), capped so the
    # grid has >= 2 steps whenever possible (keeps both v7x TCs busy).
    tb_cap = max(128, _round_up(block_b, 128))
    tb_half = max(128, _round_up(pl.cdiv(B, 2), 128))
    TB = min(tb_cap, tb_half)
    grid = pl.cdiv(B, TB)

    const2 = lambda i: (0, 0)
    out = pl.pallas_call(
        _make_kernel(compute_dtype),
        out_shape=jax.ShapeDtypeStruct((1, B), jnp.float32),
        grid=(grid,),
        in_specs=[
            # If xprof still shows exposed DMA at large TB, add
            # pipeline_mode=pl.Buffered(3) to these two batch-tile specs.
            pl.BlockSpec((TB, S), lambda i: (i, 0)),   # state tile
            pl.BlockSpec((TB, A), lambda i: (i, 0)),   # action tile
            pl.BlockSpec((Hp, K), const2),             # W1 (pre-concat), resident
            pl.BlockSpec((Hp, 1), const2),             # b1
            pl.BlockSpec((Hp, Hp), const2),            # W2, resident
            pl.BlockSpec((Hp, 1), const2),             # b2
            pl.BlockSpec((Hp, 1), const2),             # w3 column
            pl.BlockSpec(memory_space=pltpu.MemorySpace.SMEM),  # b3 scalar
        ],
        out_specs=pl.BlockSpec((1, TB), lambda i: (0, i)),       # lane-dense
        scratch_shapes=[pltpu.VMEM((TB, K), compute_dtype)],     # fused cat slab
        compiler_params=pltpu.CompilerParams(
            dimension_semantics=("parallel",),
            vmem_limit_bytes=32 * 1024 * 1024),
    )(state, action, w1cat, b1c, w2T, b2c, w3c, b3s)

    return out.reshape(B, 1)


def init_params(key, state_dim, action_dim, hidden_dim=64):
    """PyTorch nn.Linear default init: U[-1/sqrt(fan_in), 1/sqrt(fan_in)]."""
    keys = jax.random.split(key, 6)
    d_in = state_dim + action_dim

    def lin(kw, kb, fan_in, fan_out):
        bound = 1.0 / jnp.sqrt(jnp.float32(fan_in))
        w = jax.random.uniform(kw, (fan_in, fan_out), jnp.float32, -bound, bound)
        b = jax.random.uniform(kb, (1, fan_out), jnp.float32, -bound, bound)
        return w, b

    w1, b1 = lin(keys[0], keys[1], d_in, hidden_dim)
    w2, b2 = lin(keys[2], keys[3], hidden_dim, hidden_dim)
    w3, b3 = lin(keys[4], keys[5], hidden_dim, 1)
    return (w1, b1, w2, b2, w3, b3)


def _reference(state, action, params):
    w1, b1, w2, b2, w3, b3 = params
    x = jnp.concatenate([state, action], axis=1)
    x = jnp.maximum(x @ w1 + b1, 0.0)
    x = jnp.maximum(x @ w2 + b2, 0.0)
    return x @ w3 + b3


if __name__ == "__main__":
    STATE_DIM, ACTION_DIM, HIDDEN = 8, 4, 64
    key = jax.random.PRNGKey(0)
    k_s1, k_a1, k_params, k_s2, k_a2, k_s3, k_a3 = jax.random.split(key, 7)
    params = init_params(k_params, STATE_DIM, ACTION_DIM, HIDDEN)
    prepped_f32 = prepare_params(params, jnp.float32)

    # --- tiny batch (B < 128, single partial tile), f32 compute path ---
    B = 8
    state = jax.random.normal(k_s1, (B, STATE_DIM), jnp.float32)
    action = jax.random.normal(k_a1, (B, ACTION_DIM), jnp.float32)
    q = soft_q_forward(state, action, prepped_f32)
    jax.block_until_ready(q)
    q_ref = _reference(state, action, params)
    assert q.shape == (B, 1), q.shape
    assert jnp.allclose(q, q_ref, atol=1e-4, rtol=1e-4), "f32 mismatch vs reference"

    # --- multi-step grid with ragged last tile (TB=128, steps=2, tail=72) ---
    B2 = 200
    state2 = jax.random.normal(k_s2, (B2, STATE_DIM), jnp.float32)
    action2 = jax.random.normal(k_a2, (B2, ACTION_DIM), jnp.float32)
    q2 = soft_q_forward(state2, action2, prepped_f32, block_b=128)
    jax.block_until_ready(q2)
    q2_ref = _reference(state2, action2, params)
    assert q2.shape == (B2, 1), q2.shape
    assert jnp.allclose(q2, q2_ref, atol=1e-4, rtol=1e-4), "grid mismatch vs reference"

    # --- default tile, >=2 grid steps (v7x TC split), ragged tail (1000=512+488)
    B3 = 1000
    state3 = jax.random.normal(k_s3, (B3, STATE_DIM), jnp.float32)
    action3 = jax.random.normal(k_a3, (B3, ACTION_DIM), jnp.float32)
    q3 = soft_q_forward(state3, action3, prepped_f32)
    jax.block_until_ready(q3)
    q3_ref = _reference(state3, action3, params)
    assert q3.shape == (B3, 1), q3.shape
    assert jnp.allclose(q3, q3_ref, atol=1e-4, rtol=1e-4), "large-B mismatch vs reference"

    # --- bf16 MXU-input path (valid on v5e/v6e/v7x); f32 accumulate/epilogue ---
    prepped_bf16 = prepare_params(params, jnp.bfloat16)
    q4 = soft_q_forward(state2, action2, prepped_bf16, block_b=128,
                        compute_dtype=jnp.bfloat16)
    jax.block_until_ready(q4)
    assert jnp.allclose(q4, q2_ref, atol=2e-2, rtol=2e-2), "bf16 mismatch vs reference"

    print("KERNEL_OK")
</pallas_src>

<mosaic_0001>
module attributes {stable_mosaic.version = 11 : i64} {
  func.func @kernel(%arg0: i32, %arg1: memref<128x8xf32, #tpu.memory_space<vmem>>, %arg2: memref<128x4xf32, #tpu.memory_space<vmem>>, %arg3: memref<128x12xf32, #tpu.memory_space<vmem>>, %arg4: memref<128x1xf32, #tpu.memory_space<vmem>>, %arg5: memref<128x128xf32, #tpu.memory_space<vmem>>, %arg6: memref<128x1xf32, #tpu.memory_space<vmem>>, %arg7: memref<128x1xf32, #tpu.memory_space<vmem>>, %arg8: memref<1xf32, #tpu.memory_space<smem>>, %arg9: memref<1x128xf32, #tpu.memory_space<vmem>>, %arg10: memref<128x12xf32, #tpu.memory_space<vmem>>) attributes {dimension_semantics = [#tpu.dimension_semantics<parallel>], iteration_bounds = array<i64: 1>, scalar_prefetch = 0 : i64, scratch_operands = 1 : i64, tpu.core_type = #tpu.core_type<tc>, window_params = [{transform_indices = @transform_0, window_bounds = array<i64: 128, 8>}, {transform_indices = @transform_1, window_bounds = array<i64: 128, 4>}, {pipeline_mode = #tpu.pipeline_mode<synchronous>, transform_indices = @transform_2, window_bounds = array<i64: 128, 12>}, {pipeline_mode = #tpu.pipeline_mode<synchronous>, transform_indices = @transform_3, window_bounds = array<i64: 128, 1>}, {pipeline_mode = #tpu.pipeline_mode<synchronous>, transform_indices = @transform_4, window_bounds = array<i64: 128, 128>}, {pipeline_mode = #tpu.pipeline_mode<synchronous>, transform_indices = @transform_5, window_bounds = array<i64: 128, 1>}, {pipeline_mode = #tpu.pipeline_mode<synchronous>, transform_indices = @transform_6, window_bounds = array<i64: 128, 1>}, {transform_indices = @transform_7, window_bounds = array<i64: 1>}, {transform_indices = @transform_8, window_bounds = array<i64: 1, 128>}]} {
    %c0 = arith.constant 0 : index
    %c0_0 = arith.constant 0 : index
    %0 = vector.load %arg1[%c0, %c0_0] : memref<128x8xf32, #tpu.memory_space<vmem>>, vector<128x8xf32>
    %c0_1 = arith.constant 0 : index
    %c0_2 = arith.constant 0 : index
    %1 = vector.load %arg10[%c0_1, %c0_2] : memref<128x12xf32, #tpu.memory_space<vmem>>, vector<128x8xf32>
    tpu.vector_store %arg10[%c0_1, %c0_2], %0 {strides = array<i32>} : memref<128x12xf32, #tpu.memory_space<vmem>>, vector<128x8xf32>,
    %c0_3 = arith.constant 0 : index
    %c0_4 = arith.constant 0 : index
    %2 = vector.load %arg2[%c0_3, %c0_4] : memref<128x4xf32, #tpu.memory_space<vmem>>, vector<128x4xf32>
    %c0_5 = arith.constant 0 : index
    %c8 = arith.constant 8 : index
    %3 = vector.load %arg10[%c0_5, %c8] : memref<128x12xf32, #tpu.memory_space<vmem>>, vector<128x4xf32>
    tpu.vector_store %arg10[%c0_5, %c8], %2 {strides = array<i32>} : memref<128x12xf32, #tpu.memory_space<vmem>>, vector<128x4xf32>,
    %c0_6 = arith.constant 0 : index
    %c0_7 = arith.constant 0 : index
    %4 = vector.load %arg10[%c0_6, %c0_7] : memref<128x12xf32, #tpu.memory_space<vmem>>, vector<128x12xf32>
    %c0_8 = arith.constant 0 : index
    %c0_9 = arith.constant 0 : index
    %5 = vector.load %arg3[%c0_8, %c0_9] : memref<128x12xf32, #tpu.memory_space<vmem>>, vector<128x12xf32>
    %cst = arith.constant dense<0.000000e+00> : vector<128x128xf32>
    %6 = tpu.matmul %5, %4, %cst {dimension_numbers = #tpu.dot_dimension_numbers<[1], [1], [0], [0], [0, 0, 1, 0], [], []>} : vector<128x12xf32>, vector<128x12xf32>, vector<128x128xf32> -> vector<128x128xf32>
    %c0_10 = arith.constant 0 : index
    %c0_11 = arith.constant 0 : index
    %7 = vector.load %arg4[%c0_10, %c0_11] : memref<128x1xf32, #tpu.memory_space<vmem>>, vector<128x1xf32>
    %8 = vector.broadcast %7 : vector<128x1xf32> to vector<128x128xf32>
    %9 = arith.addf %6, %8 : vector<128x128xf32>
    %cst_12 = arith.constant 0.000000e+00 : f32
    %10 = vector.broadcast %cst_12 : f32 to vector<128x128xf32>
    %11 = arith.maximumf %9, %10 : vector<128x128xf32>
    %c0_13 = arith.constant 0 : index
    %c0_14 = arith.constant 0 : index
    %12 = vector.load %arg5[%c0_13, %c0_14] : memref<128x128xf32, #tpu.memory_space<vmem>>, vector<128x128xf32>
    %cst_15 = arith.constant dense<0.000000e+00> : vector<128x128xf32>
    %13 = tpu.matmul %12, %11, %cst_15 {dimension_numbers = #tpu.dot_dimension_numbers<[1], [0], [0], [1], [0, 0, 1, 1], [], []>} : vector<128x128xf32>, vector<128x128xf32>, vector<128x128xf32> -> vector<128x128xf32>
    %c0_16 = arith.constant 0 : index
    %c0_17 = arith.constant 0 : index
    %14 = vector.load %arg6[%c0_16, %c0_17] : memref<128x1xf32, #tpu.memory_space<vmem>>, vector<128x1xf32>
    %15 = vector.broadcast %14 : vector<128x1xf32> to vector<128x128xf32>
    %16 = arith.addf %13, %15 : vector<128x128xf32>
    %cst_18 = arith.constant 0.000000e+00 : f32
    %17 = vector.broadcast %cst_18 : f32 to vector<128x128xf32>
    %18 = arith.maximumf %16, %17 : vector<128x128xf32>
    %c0_19 = arith.constant 0 : index
    %c0_20 = arith.constant 0 : index
    %19 = vector.load %arg7[%c0_19, %c0_20] : memref<128x1xf32, #tpu.memory_space<vmem>>, vector<128x1xf32>
    %20 = vector.broadcast %19 : vector<128x1xf32> to vector<128x128xf32>
    %21 = arith.mulf %18, %20 : vector<128x128xf32>
    %cst_21 = arith.constant dense<0.000000e+00> : vector<128xf32>
    %22 = vector.multi_reduction <add>, %21, %cst_21 [0] : vector<128x128xf32> to vector<128xf32>
    %23 = vector.shape_cast %22 : vector<128xf32> to vector<1x128xf32>
    %c0_22 = arith.constant 0 : index
    %24 = memref.load %arg8[%c0_22] : memref<1xf32, #tpu.memory_space<smem>>
    %25 = vector.broadcast %24 : f32 to vector<1x128xf32>
    %26 = arith.addf %23, %25 : vector<1x128xf32>
    %c0_23 = arith.constant 0 : index
    %c0_24 = arith.constant 0 : index
    %27 = vector.load %arg9[%c0_23, %c0_24] : memref<1x128xf32, #tpu.memory_space<vmem>>, vector<1x128xf32>
    tpu.vector_store %arg9[%c0_23, %c0_24], %26 {strides = array<i32>} : memref<1x128xf32, #tpu.memory_space<vmem>>, vector<1x128xf32>,
    return
  }
  func.func @transform_0(%arg0: i32) -> (i32, i32) {
    %c0_i32 = arith.constant 0 : i32
    %c0_i32_0 = arith.constant 0 : i32
    return %arg0, %c0_i32 : i32, i32
  }
  func.func @transform_1(%arg0: i32) -> (i32, i32) {
    %c0_i32 = arith.constant 0 : i32
    %c0_i32_0 = arith.constant 0 : i32
    return %arg0, %c0_i32 : i32, i32
  }
  func.func @transform_2(%arg0: i32) -> (i32, i32) {
    %c0_i32 = arith.constant 0 : i32
    %c0_i32_0 = arith.constant 0 : i32
    %c0_i32_1 = arith.constant 0 : i32
    return %c0_i32, %c0_i32_0 : i32, i32
  }
  func.func @transform_3(%arg0: i32) -> (i32, i32) {
    %c0_i32 = arith.constant 0 : i32
    %c0_i32_0 = arith.constant 0 : i32
    %c0_i32_1 = arith.constant 0 : i32
    return %c0_i32, %c0_i32_0 : i32, i32
  }
  func.func @transform_4(%arg0: i32) -> (i32, i32) {
    %c0_i32 = arith.constant 0 : i32
    %c0_i32_0 = arith.constant 0 : i32
    %c0_i32_1 = arith.constant 0 : i32
    return %c0_i32, %c0_i32_0 : i32, i32
  }
  func.func @transform_5(%arg0: i32) -> (i32, i32) {
    %c0_i32 = arith.constant 0 : i32
    %c0_i32_0 = arith.constant 0 : i32
    %c0_i32_1 = arith.constant 0 : i32
    return %c0_i32, %c0_i32_0 : i32, i32
  }
  func.func @transform_6(%arg0: i32) -> (i32, i32) {
    %c0_i32 = arith.constant 0 : i32
    %c0_i32_0 = arith.constant 0 : i32
    %c0_i32_1 = arith.constant 0 : i32
    return %c0_i32, %c0_i32_0 : i32, i32
  }
  func.func @transform_7(%arg0: i32) -> i32 {
    %c0_i32 = arith.constant 0 : i32
    %c0_i32_0 = arith.constant 0 : i32
    return %c0_i32 : i32
  }
  func.func @transform_8(%arg0: i32) -> (i32, i32) {
    %c0_i32 = arith.constant 0 : i32
    %c0_i32_0 = arith.constant 0 : i32
    return %c0_i32, %arg0 : i32, i32
  }
}

</mosaic_0001>

<llo_original>
// kernel: tpu_custom_call.1
$region0: #{tpu_custom_call.1}
  #allocation0 [shape = 'u32[]', space=smem, size = 0x4, offset = 0x4, fixed_abs, tag = 'smem constant byte address 0x4 - core index']
  #allocation1 [shape = 'u32[72,128]{1,0:T(1,128)}', space=vmem, size = 0x9000, scoped, tag = 'internal scratch']
  #allocation2 [shape = 'f32[128,12]{1,0:T(8,128)}', space=vmem, size = 0x10000, scoped, tag = 'scratch operand']
  #allocation3 [shape = 'f32[1]{0:T(128)S(6)}', space=smem, size = 0x200, scoped, tag = 'scoped memory for tpu_custom_call.1']
  %s0 = inlined_call_operand.vmem [shape: f32[8,8], index: 0, kind: input, shape index: {}]
  %s1 = inlined_call_operand.vmem [shape: f32[8,4], index: 1, kind: input, shape index: {}]
  %s2 = inlined_call_operand.vmem [shape: f32[128,12], index: 2, kind: input, shape index: {}]
  %s3 = inlined_call_operand.vmem [shape: f32[128,1], index: 3, kind: input, shape index: {}]
  %s4 = inlined_call_operand.vmem [shape: f32[128,128], index: 4, kind: input, shape index: {}]
  %s5 = inlined_call_operand.vmem [shape: f32[128,1], index: 5, kind: input, shape index: {}]
  %s6 = inlined_call_operand.vmem [shape: f32[128,1], index: 6, kind: input, shape index: {}]
  %s7 = inlined_call_operand.<no memory space> [shape: f32[1], index: 7, kind: input, shape index: {}]
  %s8 = inlined_call_operand.hbm [shape: f32[1,8], index: 8, kind: output, shape index: {}]
  %s9 = sld [smem:[#allocation0]]
  $region42: #{tpu_custom_call.1} parent=0
    _
  %s11 = ssub.s32 1, %s9
  %s12 = scalar_select 0, %s11, %s9
  %13 = sst [smem:[#allocation3]] %s7
  $region1: #{tpu_custom_call.1} parent=0
    #allocation4 [shape = 'u8[512]{0}', space=vmem, size = 0x400, scoped, tag = 'output window, operand 0, single buffered']
    #allocation5 [shape = 's32[1]{0}', space=sflag, size = 0x4, scoped, tag = 'scoped memory for tpu_custom_call.1']
    %14 = vsyncpa [#allocation5], 0
    // Predicated region
    $region2: #{tpu_custom_call.1} parent=1 // pred_check
      _
    $region3: #{tpu_custom_call.1} parent=1 // pred_check_branch
      %16 = sbr.rel (0) target = $region5
    $region4: #{tpu_custom_call.1} parent=1 // pred_region
      _
    $region5: #{tpu_custom_call.1} parent=1 // pred_fallthru
      _
    // Predicated region
    $region6: #{tpu_custom_call.1} parent=1 // pred_check
      _
    $region7: #{tpu_custom_call.1} parent=1 // pred_check_branch
      %18 = sbr.rel (0) target = $region9
    $region8: #{tpu_custom_call.1} parent=1 // pred_region
      _
    $region9: #{tpu_custom_call.1} parent=1 // pred_fallthru
      _
    // Predicated region
    $region10: #{tpu_custom_call.1} parent=1 // pred_check
      _
    $region11: #{tpu_custom_call.1} parent=1 // pred_check_branch
      %20 = sbr.rel (0) target = $region13
    $region12: #{tpu_custom_call.1} parent=1 // pred_region
      _
    $region13: #{tpu_custom_call.1} parent=1 // pred_fallthru
      _
    // Predicated region
    $region14: #{tpu_custom_call.1} parent=1 // pred_check
      _
    $region15: #{tpu_custom_call.1} parent=1 // pred_check_branch
      %22 = sbr.rel (0) target = $region17
    $region16: #{tpu_custom_call.1} parent=1 // pred_region
      _
    $region17: #{tpu_custom_call.1} parent=1 // pred_fallthru
      _
    // Predicated region
    $region18: #{tpu_custom_call.1} parent=1 // pred_check
      _
    $region19: #{tpu_custom_call.1} parent=1 // pred_check_branch
      %24 = sbr.rel (0) target = $region21
    $region20: #{tpu_custom_call.1} parent=1 // pred_region
      _
    $region21: #{tpu_custom_call.1} parent=1 // pred_fallthru
      _
    // Predicated region
    $region22: #{tpu_custom_call.1} parent=1 // pred_check
      _
    $region23: #{tpu_custom_call.1} parent=1 // pred_check_branch
      %26 = sbr.rel (0) target = $region25
    $region24: #{tpu_custom_call.1} parent=1 // pred_region
      _
    $region25: #{tpu_custom_call.1} parent=1 // pred_fallthru
      _
    // Predicated region
    $region26: #{tpu_custom_call.1} parent=1 // pred_check
      _
    $region27: #{tpu_custom_call.1} parent=1 // pred_check_branch
      %28 = sbr.rel (0) target = $region29
    $region28: #{tpu_custom_call.1} parent=1 // pred_region
      _
    $region29: #{tpu_custom_call.1} parent=1 // pred_fallthru
      _
    // Predicated region
    $region30: #{tpu_custom_call.1} parent=1 // pred_check
      _
    $region31: #{tpu_custom_call.1} parent=1 // pred_check_branch
      %30 = sbr.rel (0) target = $region33
    $region32: #{tpu_custom_call.1} parent=1 // pred_region
      _
    $region33: #{tpu_custom_call.1} parent=1 // pred_fallthru
      _
    %v31 = vld [vmem:[%s0] sm:$0xff]
    %v32 = vld [vmem:[%s0 + $0x8] sm:$0xff]
    %v33 = vld [vmem:[%s0 + $0x10] sm:$0xff]
    %v34 = vld [vmem:[%s0 + $0x18] sm:$0xff]
    %v35 = vld [vmem:[%s0 + $0x20] sm:$0xff]
    %v36 = vld [vmem:[%s0 + $0x28] sm:$0xff]
    %v37 = vld [vmem:[%s0 + $0x30] sm:$0xff]
    %v38 = vld [vmem:[%s0 + $0x38] sm:$0xff]
    %v39 = vld [vmem:[%s0 + $0x40] sm:$0xff]
    %v40 = vld [vmem:[%s0 + $0x48] sm:$0xff]
    %v41 = vld [vmem:[%s0 + $0x50] sm:$0xff]
    %v42 = vld [vmem:[%s0 + $0x58] sm:$0xff]
    %v43 = vld [vmem:[%s0 + $0x60] sm:$0xff]
    %v44 = vld [vmem:[%s0 + $0x68] sm:$0xff]
    %v45 = vld [vmem:[%s0 + $0x70] sm:$0xff]
    %v46 = vld [vmem:[%s0 + $0x78] sm:$0xff]
    %vm47 = vcmask 64512
    %48 = vst.msk [vmem:[#allocation2] sm:$0xff] %vm47, %v31
    %49 = vst.msk [vmem:[#allocation2 + $0x8] sm:$0xff] %vm47, %v32
    %50 = vst.msk [vmem:[#allocation2 + $0x10] sm:$0xff] %vm47, %v33
    %51 = vst.msk [vmem:[#allocation2 + $0x18] sm:$0xff] %vm47, %v34
    %52 = vst.msk [vmem:[#allocation2 + $0x20] sm:$0xff] %vm47, %v35
    %53 = vst.msk [vmem:[#allocation2 + $0x28] sm:$0xff] %vm47, %v36
    %54 = vst.msk [vmem:[#allocation2 + $0x30] sm:$0xff] %vm47, %v37
    %55 = vst.msk [vmem:[#allocation2 + $0x38] sm:$0xff] %vm47, %v38
    %56 = vst.msk [vmem:[#allocation2 + $0x40] sm:$0xff] %vm47, %v39
    %57 = vst.msk [vmem:[#allocation2 + $0x48] sm:$0xff] %vm47, %v40
    %58 = vst.msk [vmem:[#allocation2 + $0x50] sm:$0xff] %vm47, %v41
    %59 = vst.msk [vmem:[#allocation2 + $0x58] sm:$0xff] %vm47, %v42
    %60 = vst.msk [vmem:[#allocation2 + $0x60] sm:$0xff] %vm47, %v43
    %61 = vst.msk [vmem:[#allocation2 + $0x68] sm:$0xff] %vm47, %v44
    %62 = vst.msk [vmem:[#allocation2 + $0x70] sm:$0xff] %vm47, %v45
    %63 = vst.msk [vmem:[#allocation2 + $0x78] sm:$0xff] %vm47, %v46
    %v64 = vld [vmem:[%s1] sm:$0xff]
    %v65 = vld [vmem:[%s1 + $0x8] sm:$0xff]
    %v66 = vld [vmem:[%s1 + $0x10] sm:$0xff]
    %v67 = vld [vmem:[%s1 + $0x18] sm:$0xff]
    %v68 = vld [vmem:[%s1 + $0x20] sm:$0xff]
    %v69 = vld [vmem:[%s1 + $0x28] sm:$0xff]
    %v70 = vld [vmem:[%s1 + $0x30] sm:$0xff]
    %v71 = vld [vmem:[%s1 + $0x38] sm:$0xff]
    %v72 = vld [vmem:[%s1 + $0x40] sm:$0xff]
    %v73 = vld [vmem:[%s1 + $0x48] sm:$0xff]
    %v74 = vld [vmem:[%s1 + $0x50] sm:$0xff]
    %v75 = vld [vmem:[%s1 + $0x58] sm:$0xff]
    %v76 = vld [vmem:[%s1 + $0x60] sm:$0xff]
    %v77 = vld [vmem:[%s1 + $0x68] sm:$0xff]
    %v78 = vld [vmem:[%s1 + $0x70] sm:$0xff]
    %v79 = vld [vmem:[%s1 + $0x78] sm:$0xff]
    %96 = vrot.lane.b32.xlu0 %v64, 8
    %v97 = vpop.permute.xlu0 %96
    %98 = vrot.lane.b32.xlu0 %v65, 8
    %v99 = vpop.permute.xlu0 %98
    %100 = vrot.lane.b32.xlu0 %v66, 8
    %v101 = vpop.permute.xlu0 %100
    %102 = vrot.lane.b32.xlu0 %v67, 8
    %v103 = vpop.permute.xlu0 %102
    %104 = vrot.lane.b32.xlu0 %v68, 8
    %v105 = vpop.permute.xlu0 %104
    %106 = vrot.lane.b32.xlu0 %v69, 8
    %v107 = vpop.permute.xlu0 %106
    %108 = vrot.lane.b32.xlu0 %v70, 8
    %v109 = vpop.permute.xlu0 %108
    %110 = vrot.lane.b32.xlu0 %v71, 8
    %v111 = vpop.permute.xlu0 %110
    %112 = vrot.lane.b32.xlu0 %v72, 8
    %v113 = vpop.permute.xlu0 %112
    %114 = vrot.lane.b32.xlu0 %v73, 8
    %v115 = vpop.permute.xlu0 %114
    %116 = vrot.lane.b32.xlu0 %v74, 8
    %v117 = vpop.permute.xlu0 %116
    %118 = vrot.lane.b32.xlu0 %v75, 8
    %v119 = vpop.permute.xlu0 %118
    %120 = vrot.lane.b32.xlu0 %v76, 8
    %v121 = vpop.permute.xlu0 %120
    %122 = vrot.lane.b32.xlu0 %v77, 8
    %v123 = vpop.permute.xlu0 %122
    %124 = vrot.lane.b32.xlu0 %v78, 8
    %v125 = vpop.permute.xlu0 %124
    %126 = vrot.lane.b32.xlu0 %v79, 8
    %v127 = vpop.permute.xlu0 %126
    %vm144 = vcmask 97344
    %145 = vst.msk [vmem:[#allocation2] sm:$0xff] %vm144, %v97
    %146 = vst.msk [vmem:[#allocation2 + $0x8] sm:$0xff] %vm144, %v99
    %147 = vst.msk [vmem:[#allocation2 + $0x10] sm:$0xff] %vm144, %v101
    %148 = vst.msk [vmem:[#allocation2 + $0x18] sm:$0xff] %vm144, %v103
    %149 = vst.msk [vmem:[#allocation2 + $0x20] sm:$0xff] %vm144, %v105
    %150 = vst.msk [vmem:[#allocation2 + $0x28] sm:$0xff] %vm144, %v107
    %151 = vst.msk [vmem:[#allocation2 + $0x30] sm:$0xff] %vm144, %v109
    %152 = vst.msk [vmem:[#allocation2 + $0x38] sm:$0xff] %vm144, %v111
    %153 = vst.msk [vmem:[#allocation2 + $0x40] sm:$0xff] %vm144, %v113
    %154 = vst.msk [vmem:[#allocation2 + $0x48] sm:$0xff] %vm144, %v115
    %155 = vst.msk [vmem:[#allocation2 + $0x50] sm:$0xff] %vm144, %v117
    %156 = vst.msk [vmem:[#allocation2 + $0x58] sm:$0xff] %vm144, %v119
    %157 = vst.msk [vmem:[#allocation2 + $0x60] sm:$0xff] %vm144, %v121
    %158 = vst.msk [vmem:[#allocation2 + $0x68] sm:$0xff] %vm144, %v123
    %159 = vst.msk [vmem:[#allocation2 + $0x70] sm:$0xff] %vm144, %v125
    %160 = vst.msk [vmem:[#allocation2 + $0x78] sm:$0xff] %vm144, %v127
    %v161 = vld [vmem:[#allocation2] sm:$0xff]
    %v162 = vld [vmem:[#allocation2 + $0x8] sm:$0xff]
    %v163 = vld [vmem:[#allocation2 + $0x10] sm:$0xff]
    %v164 = vld [vmem:[#allocation2 + $0x18] sm:$0xff]
    %v165 = vld [vmem:[#allocation2 + $0x20] sm:$0xff]
    %v166 = vld [vmem:[#allocation2 + $0x28] sm:$0xff]
    %v167 = vld [vmem:[#allocation2 + $0x30] sm:$0xff]
    %v168 = vld [vmem:[#allocation2 + $0x38] sm:$0xff]
    %v169 = vld [vmem:[#allocation2 + $0x40] sm:$0xff]
    %v170 = vld [vmem:[#allocation2 + $0x48] sm:$0xff]
    %v171 = vld [vmem:[#allocation2 + $0x50] sm:$0xff]
    %v172 = vld [vmem:[#allocation2 + $0x58] sm:$0xff]
    %v173 = vld [vmem:[#allocation2 + $0x60] sm:$0xff]
    %v174 = vld [vmem:[#allocation2 + $0x68] sm:$0xff]
    %v175 = vld [vmem:[#allocation2 + $0x70] sm:$0xff]
    %v176 = vld [vmem:[#allocation2 + $0x78] sm:$0xff]
    %v177 = vld [vmem:[%s2] sm:$0xff]
    %v178 = vld [vmem:[%s2 + $0x8] sm:$0xff]
    %v179 = vld [vmem:[%s2 + $0x10] sm:$0xff]
    %v180 = vld [vmem:[%s2 + $0x18] sm:$0xff]
    %v181 = vld [vmem:[%s2 + $0x20] sm:$0xff]
    %v182 = vld [vmem:[%s2 + $0x28] sm:$0xff]
    %v183 = vld [vmem:[%s2 + $0x30] sm:$0xff]
    %v184 = vld [vmem:[%s2 + $0x38] sm:$0xff]
    %v185 = vld [vmem:[%s2 + $0x40] sm:$0xff]
    %v186 = vld [vmem:[%s2 + $0x48] sm:$0xff]
    %v187 = vld [vmem:[%s2 + $0x50] sm:$0xff]
    %v188 = vld [vmem:[%s2 + $0x58] sm:$0xff]
    %v189 = vld [vmem:[%s2 + $0x60] sm:$0xff]
    %v190 = vld [vmem:[%s2 + $0x68] sm:$0xff]
    %v191 = vld [vmem:[%s2 + $0x70] sm:$0xff]
    %v192 = vld [vmem:[%s2 + $0x78] sm:$0xff]
    %v193 = vld [vmem:[%s3] sm:$0xff]
    %v194 = vld [vmem:[%s3 + $0x8] sm:$0xff]
    %v195 = vld [vmem:[%s3 + $0x10] sm:$0xff]
    %v196 = vld [vmem:[%s3 + $0x18] sm:$0xff]
    %v197 = vld [vmem:[%s3 + $0x20] sm:$0xff]
    %v198 = vld [vmem:[%s3 + $0x28] sm:$0xff]
    %v199 = vld [vmem:[%s3 + $0x30] sm:$0xff]
    %v200 = vld [vmem:[%s3 + $0x38] sm:$0xff]
    %v201 = vld [vmem:[%s3 + $0x40] sm:$0xff]
    %v202 = vld [vmem:[%s3 + $0x48] sm:$0xff]
    %v203 = vld [vmem:[%s3 + $0x50] sm:$0xff]
    %v204 = vld [vmem:[%s3 + $0x58] sm:$0xff]
    %v205 = vld [vmem:[%s3 + $0x60] sm:$0xff]
    %v206 = vld [vmem:[%s3 + $0x68] sm:$0xff]
    %v207 = vld [vmem:[%s3 + $0x70] sm:$0xff]
    %v208 = vld [vmem:[%s3 + $0x78] sm:$0xff]
    %210 = vset.pattern.permute.xlu0 0
    %211 = vperm.xlu0 %210, %v193
    %v212 = vpop.permute.xlu0 %211
    %215 = vset.pattern.permute.xlu0 0
    %216 = vperm.xlu0 %215, %v194
    %v217 = vpop.permute.xlu0 %216
    %220 = vset.pattern.permute.xlu0 0
    %221 = vperm.xlu0 %220, %v195
    %v222 = vpop.permute.xlu0 %221
    %225 = vset.pattern.permute.xlu0 0
    %226 = vperm.xlu0 %225, %v196
    %v227 = vpop.permute.xlu0 %226
    %230 = vset.pattern.permute.xlu0 0
    %231 = vperm.xlu0 %230, %v197
    %v232 = vpop.permute.xlu0 %231
    %235 = vset.pattern.permute.xlu0 0
    %236 = vperm.xlu0 %235, %v198
    %v237 = vpop.permute.xlu0 %236
    %240 = vset.pattern.permute.xlu0 0
    %241 = vperm.xlu0 %240, %v199
    %v242 = vpop.permute.xlu0 %241
    %245 = vset.pattern.permute.xlu0 0
    %246 = vperm.xlu0 %245, %v200
    %v247 = vpop.permute.xlu0 %246
    %250 = vset.pattern.permute.xlu0 0
    %251 = vperm.xlu0 %250, %v201
    %v252 = vpop.permute.xlu0 %251
    %255 = vset.pattern.permute.xlu0 0
    %256 = vperm.xlu0 %255, %v202
    %v257 = vpop.permute.xlu0 %256
    %260 = vset.pattern.permute.xlu0 0
    %261 = vperm.xlu0 %260, %v203
    %v262 = vpop.permute.xlu0 %261
    %265 = vset.pattern.permute.xlu0 0
    %266 = vperm.xlu0 %265, %v204
    %v267 = vpop.permute.xlu0 %266
    %270 = vset.pattern.permute.xlu0 0
    %271 = vperm.xlu0 %270, %v205
    %v272 = vpop.permute.xlu0 %271
    %275 = vset.pattern.permute.xlu0 0
    %276 = vperm.xlu0 %275, %v206
    %v277 = vpop.permute.xlu0 %276
    %280 = vset.pattern.permute.xlu0 0
    %281 = vperm.xlu0 %280, %v207
    %v282 = vpop.permute.xlu0 %281
    %285 = vset.pattern.permute.xlu0 0
    %286 = vperm.xlu0 %285, %v208
    %v287 = vpop.permute.xlu0 %286
    %vm289 = vcmask 97280
    %v291 = vsel %vm289, %v177, 0
    %v294 = vsel %vm289, %v178, 0
    %v297 = vsel %vm289, %v179, 0
    %v300 = vsel %vm289, %v180, 0
    %v303 = vsel %vm289, %v181, 0
    %v306 = vsel %vm289, %v182, 0
    %v309 = vsel %vm289, %v183, 0
    %v312 = vsel %vm289, %v184, 0
    %v315 = vsel %vm289, %v185, 0
    %v318 = vsel %vm289, %v186, 0
    %v321 = vsel %vm289, %v187, 0
    %v324 = vsel %vm289, %v188, 0
    %v327 = vsel %vm289, %v189, 0
    %v330 = vsel %vm289, %v190, 0
    %v333 = vsel %vm289, %v191, 0
    %v336 = vsel %vm289, %v192, 0
    %v339 = vsel %vm289, %v161, 0
    %v342 = vsel %vm289, %v162, 0
    %v345 = vsel %vm289, %v163, 0
    %v348 = vsel %vm289, %v164, 0
    %v351 = vsel %vm289, %v165, 0
    %v354 = vsel %vm289, %v166, 0
    %v357 = vsel %vm289, %v167, 0
    %v360 = vsel %vm289, %v168, 0
    %v363 = vsel %vm289, %v169, 0
    %v366 = vsel %vm289, %v170, 0
    %v369 = vsel %vm289, %v171, 0
    %v372 = vsel %vm289, %v172, 0
    %v375 = vsel %vm289, %v173, 0
    %v378 = vsel %vm289, %v174, 0
    %v381 = vsel %vm289, %v175, 0
    %v384 = vsel %vm289, %v176, 0
    %386 = vmatpush.xpose.msra.mxu0 %v384
    %387 = vmatpush.xpose.msra.mxu0 %v381
    %388 = vmatpush.xpose.msra.mxu0 %v378
    %389 = vmatpush.xpose.msra.mxu0 %v375
    %390 = vmatpush.xpose.msra.mxu0 %v372
    %391 = vmatpush.xpose.msra.mxu0 %v369
    %392 = vmatpush.xpose.msra.mxu0 %v366
    %393 = vmatpush.xpose.msra.mxu0 %v363
    %394 = vmatpush.xpose.msra.mxu0 %v360
    %395 = vmatpush.xpose.msra.mxu0 %v357
    %396 = vmatpush.xpose.msra.mxu0 %v354
    %397 = vmatpush.xpose.msra.mxu0 %v351
    %398 = vmatpush.xpose.msra.mxu0 %v348
    %399 = vmatpush.xpose.msra.mxu0 %v345
    %400 = vmatpush.xpose.msra.mxu0 %v342
    %401 = vmatpush.xpose.msra.mxu0 %v339
    %402 = vmatmul.f32.gmra.mxu0 %v291
    %v403 = vpop.f32.mrf.mxu0
    %v404 = vadd.f32 %v212, %v403
    %405 = vmatmul.f32.gmra.mxu0 %v294
    %v406 = vpop.f32.mrf.mxu0
    %v407 = vadd.f32 %v217, %v406
    %408 = vmatmul.f32.gmra.mxu0 %v297
    %v409 = vpop.f32.mrf.mxu0
    %v410 = vadd.f32 %v222, %v409
    %411 = vmatmul.f32.gmra.mxu0 %v300
    %v412 = vpop.f32.mrf.mxu0
    %v413 = vadd.f32 %v227, %v412
    %414 = vmatmul.f32.gmra.mxu0 %v303
    %v415 = vpop.f32.mrf.mxu0
    %v416 = vadd.f32 %v232, %v415
    %417 = vmatmul.f32.gmra.mxu0 %v306
    %v418 = vpop.f32.mrf.mxu0
    %v419 = vadd.f32 %v237, %v418
    %420 = vmatmul.f32.gmra.mxu0 %v309
    %v421 = vpop.f32.mrf.mxu0
    %v422 = vadd.f32 %v242, %v421
    %423 = vmatmul.f32.gmra.mxu0 %v312
    %v424 = vpop.f32.mrf.mxu0
    %v425 = vadd.f32 %v247, %v424
    %426 = vmatmul.f32.gmra.mxu0 %v315
    %v427 = vpop.f32.mrf.mxu0
    %v428 = vadd.f32 %v252, %v427
    %429 = vmatmul.f32.gmra.mxu0 %v318
    %v430 = vpop.f32.mrf.mxu0
    %v431 = vadd.f32 %v257, %v430
    %432 = vmatmul.f32.gmra.mxu0 %v321
    %v433 = vpop.f32.mrf.mxu0
    %v434 = vadd.f32 %v262, %v433
    %435 = vmatmul.f32.gmra.mxu0 %v324
    %v436 = vpop.f32.mrf.mxu0
    %v437 = vadd.f32 %v267, %v436
    %438 = vmatmul.f32.gmra.mxu0 %v327
    %v439 = vpop.f32.mrf.mxu0
    %v440 = vadd.f32 %v272, %v439
    %441 = vmatmul.f32.gmra.mxu0 %v330
    %v442 = vpop.f32.mrf.mxu0
    %v443 = vadd.f32 %v277, %v442
    %444 = vmatmul.f32.gmra.mxu0 %v333
    %v445 = vpop.f32.mrf.mxu0
    %v446 = vadd.f32 %v282, %v445
    %447 = vmatmul.f32.gmra.mxu0 %v336
    %v448 = vpop.f32.mrf.mxu0
    %v449 = vadd.f32 %v287, %v448
    %450 = vdwg.mxu0
    %v451 = vmax.f32 %v404, 0.0
    %v452 = vmax.f32 %v407, 0.0
    %v453 = vmax.f32 %v410, 0.0
    %v454 = vmax.f32 %v413, 0.0
    %v455 = vmax.f32 %v416, 0.0
    %v456 = vmax.f32 %v419, 0.0
    %v457 = vmax.f32 %v422, 0.0
    %v458 = vmax.f32 %v425, 0.0
    %v459 = vmax.f32 %v428, 0.0
    %v460 = vmax.f32 %v431, 0.0
    %v461 = vmax.f32 %v434, 0.0
    %v462 = vmax.f32 %v437, 0.0
    %v463 = vmax.f32 %v440, 0.0
    %v464 = vmax.f32 %v443, 0.0
    %v465 = vmax.f32 %v446, 0.0
    %v466 = vmax.f32 %v449, 0.0
    %v467 = vld [vmem:[%s4] sm:$0xff]
    %v468 = vld [vmem:[%s4 + $0x8] sm:$0xff]
    %v469 = vld [vmem:[%s4 + $0x10] sm:$0xff]
    %v470 = vld [vmem:[%s4 + $0x18] sm:$0xff]
    %v471 = vld [vmem:[%s4 + $0x20] sm:$0xff]
    %v472 = vld [vmem:[%s4 + $0x28] sm:$0xff]
    %v473 = vld [vmem:[%s4 + $0x30] sm:$0xff]
    %v474 = vld [vmem:[%s4 + $0x38] sm:$0xff]
    %v475 = vld [vmem:[%s4 + $0x40] sm:$0xff]
    %v476 = vld [vmem:[%s4 + $0x48] sm:$0xff]
    %v477 = vld [vmem:[%s4 + $0x50] sm:$0xff]
    %v478 = vld [vmem:[%s4 + $0x58] sm:$0xff]
    %v479 = vld [vmem:[%s4 + $0x60] sm:$0xff]
    %v480 = vld [vmem:[%s4 + $0x68] sm:$0xff]
    %v481 = vld [vmem:[%s4 + $0x70] sm:$0xff]
    %v482 = vld [vmem:[%s4 + $0x78] sm:$0xff]
    %v483 = vld [vmem:[%s5] sm:$0xff]
    %v484 = vld [vmem:[%s5 + $0x8] sm:$0xff]
    %v485 = vld [vmem:[%s5 + $0x10] sm:$0xff]
    %v486 = vld [vmem:[%s5 + $0x18] sm:$0xff]
    %v487 = vld [vmem:[%s5 + $0x20] sm:$0xff]
    %v488 = vld [vmem:[%s5 + $0x28] sm:$0xff]
    %v489 = vld [vmem:[%s5 + $0x30] sm:$0xff]
    %v490 = vld [vmem:[%s5 + $0x38] sm:$0xff]
    %v491 = vld [vmem:[%s5 + $0x40] sm:$0xff]
    %v492 = vld [vmem:[%s5 + $0x48] sm:$0xff]
    %v493 = vld [vmem:[%s5 + $0x50] sm:$0xff]
    %v494 = vld [vmem:[%s5 + $0x58] sm:$0xff]
    %v495 = vld [vmem:[%s5 + $0x60] sm:$0xff]
    %v496 = vld [vmem:[%s5 + $0x68] sm:$0xff]
    %v497 = vld [vmem:[%s5 + $0x70] sm:$0xff]
    %v498 = vld [vmem:[%s5 + $0x78] sm:$0xff]
    %500 = vset.pattern.permute.xlu0 0
    %501 = vperm.xlu0 %500, %v483
    %v502 = vpop.permute.xlu0 %501
    %505 = vset.pattern.permute.xlu0 0
    %506 = vperm.xlu0 %505, %v484
    %v507 = vpop.permute.xlu0 %506
    %510 = vset.pattern.permute.xlu0 0
    %511 = vperm.xlu0 %510, %v485
    %v512 = vpop.permute.xlu0 %511
    %515 = vset.pattern.permute.xlu0 0
    %516 = vperm.xlu0 %515, %v486
    %v517 = vpop.permute.xlu0 %516
    %520 = vset.pattern.permute.xlu0 0
    %521 = vperm.xlu0 %520, %v487
    %v522 = vpop.permute.xlu0 %521
    %525 = vset.pattern.permute.xlu0 0
    %526 = vperm.xlu0 %525, %v488
    %v527 = vpop.permute.xlu0 %526
    %530 = vset.pattern.permute.xlu0 0
    %531 = vperm.xlu0 %530, %v489
    %v532 = vpop.permute.xlu0 %531
    %535 = vset.pattern.permute.xlu0 0
    %536 = vperm.xlu0 %535, %v490
    %v537 = vpop.permute.xlu0 %536
    %540 = vset.pattern.permute.xlu0 0
    %541 = vperm.xlu0 %540, %v491
    %v542 = vpop.permute.xlu0 %541
    %545 = vset.pattern.permute.xlu0 0
    %546 = vperm.xlu0 %545, %v492
    %v547 = vpop.permute.xlu0 %546
    %550 = vset.pattern.permute.xlu0 0
    %551 = vperm.xlu0 %550, %v493
    %v552 = vpop.permute.xlu0 %551
    %555 = vset.pattern.permute.xlu0 0
    %556 = vperm.xlu0 %555, %v494
    %v557 = vpop.permute.xlu0 %556
    %560 = vset.pattern.permute.xlu0 0
    %561 = vperm.xlu0 %560, %v495
    %v562 = vpop.permute.xlu0 %561
    %565 = vset.pattern.permute.xlu0 0
    %566 = vperm.xlu0 %565, %v496
    %v567 = vpop.permute.xlu0 %566
    %570 = vset.pattern.permute.xlu0 0
    %571 = vperm.xlu0 %570, %v497
    %v572 = vpop.permute.xlu0 %571
    %575 = vset.pattern.permute.xlu0 0
    %576 = vperm.xlu0 %575, %v498
    %v577 = vpop.permute.xlu0 %576
    %579 = vmatpush.msra.mxu0 %v466
    %580 = vmatpush.msra.mxu0 %v465
    %581 = vmatpush.msra.mxu0 %v464
    %582 = vmatpush.msra.mxu0 %v463
    %583 = vmatpush.msra.mxu0 %v462
    %584 = vmatpush.msra.mxu0 %v461
    %585 = vmatpush.msra.mxu0 %v460
    %586 = vmatpush.msra.mxu0 %v459
    %587 = vmatpush.msra.mxu0 %v458
    %588 = vmatpush.msra.mxu0 %v457
    %589 = vmatpush.msra.mxu0 %v456
    %590 = vmatpush.msra.mxu0 %v455
    %591 = vmatpush.msra.mxu0 %v454
    %592 = vmatpush.msra.mxu0 %v453
    %593 = vmatpush.msra.mxu0 %v452
    %594 = vmatpush.msra.mxu0 %v451
    %595 = vmatmul.f32.gmra.mxu0 %v467
    %v596 = vpop.f32.mrf.mxu0
    %v597 = vadd.f32 %v502, %v596
    %598 = vmatmul.f32.gmra.mxu0 %v468
    %v599 = vpop.f32.mrf.mxu0
    %v600 = vadd.f32 %v507, %v599
    %601 = vmatmul.f32.gmra.mxu0 %v469
    %v602 = vpop.f32.mrf.mxu0
    %v603 = vadd.f32 %v512, %v602
    %604 = vmatmul.f32.gmra.mxu0 %v470
    %v605 = vpop.f32.mrf.mxu0
    %v606 = vadd.f32 %v517, %v605
    %607 = vmatmul.f32.gmra.mxu0 %v471
    %v608 = vpop.f32.mrf.mxu0
    %v609 = vadd.f32 %v522, %v608
    %610 = vmatmul.f32.gmra.mxu0 %v472
    %v611 = vpop.f32.mrf.mxu0
    %v612 = vadd.f32 %v527, %v611
    %613 = vmatmul.f32.gmra.mxu0 %v473
    %v614 = vpop.f32.mrf.mxu0
    %v615 = vadd.f32 %v532, %v614
    %616 = vmatmul.f32.gmra.mxu0 %v474
    %v617 = vpop.f32.mrf.mxu0
    %v618 = vadd.f32 %v537, %v617
    %619 = vmatmul.f32.gmra.mxu0 %v475
    %v620 = vpop.f32.mrf.mxu0
    %v621 = vadd.f32 %v542, %v620
    %622 = vmatmul.f32.gmra.mxu0 %v476
    %v623 = vpop.f32.mrf.mxu0
    %v624 = vadd.f32 %v547, %v623
    %625 = vmatmul.f32.gmra.mxu0 %v477
    %v626 = vpop.f32.mrf.mxu0
    %v627 = vadd.f32 %v552, %v626
    %628 = vmatmul.f32.gmra.mxu0 %v478
    %v629 = vpop.f32.mrf.mxu0
    %v630 = vadd.f32 %v557, %v629
    %631 = vmatmul.f32.gmra.mxu0 %v479
    %v632 = vpop.f32.mrf.mxu0
    %v633 = vadd.f32 %v562, %v632
    %634 = vmatmul.f32.gmra.mxu0 %v480
    %v635 = vpop.f32.mrf.mxu0
    %v636 = vadd.f32 %v567, %v635
    %637 = vmatmul.f32.gmra.mxu0 %v481
    %v638 = vpop.f32.mrf.mxu0
    %v639 = vadd.f32 %v572, %v638
    %640 = vmatmul.f32.gmra.mxu0 %v482
    %v641 = vpop.f32.mrf.mxu0
    %v642 = vadd.f32 %v577, %v641
    %643 = vdwg.mxu0
    %v644 = vmax.f32 %v597, 0.0
    %v645 = vmax.f32 %v600, 0.0
    %v646 = vmax.f32 %v603, 0.0
    %v647 = vmax.f32 %v606, 0.0
    %v648 = vmax.f32 %v609, 0.0
    %v649 = vmax.f32 %v612, 0.0
    %v650 = vmax.f32 %v615, 0.0
    %v651 = vmax.f32 %v618, 0.0
    %v652 = vmax.f32 %v621, 0.0
    %v653 = vmax.f32 %v624, 0.0
    %v654 = vmax.f32 %v627, 0.0
    %v655 = vmax.f32 %v630, 0.0
    %v656 = vmax.f32 %v633, 0.0
    %v657 = vmax.f32 %v636, 0.0
    %v658 = vmax.f32 %v639, 0.0
    %v659 = vmax.f32 %v642, 0.0
    %v660 = vld [vmem:[%s6] sm:$0xff]
    %v661 = vld [vmem:[%s6 + $0x8] sm:$0xff]
    %v662 = vld [vmem:[%s6 + $0x10] sm:$0xff]
    %v663 = vld [vmem:[%s6 + $0x18] sm:$0xff]
    %v664 = vld [vmem:[%s6 + $0x20] sm:$0xff]
    %v665 = vld [vmem:[%s6 + $0x28] sm:$0xff]
    %v666 = vld [vmem:[%s6 + $0x30] sm:$0xff]
    %v667 = vld [vmem:[%s6 + $0x38] sm:$0xff]
    %v668 = vld [vmem:[%s6 + $0x40] sm:$0xff]
    %v669 = vld [vmem:[%s6 + $0x48] sm:$0xff]
    %v670 = vld [vmem:[%s6 + $0x50] sm:$0xff]
    %v671 = vld [vmem:[%s6 + $0x58] sm:$0xff]
    %v672 = vld [vmem:[%s6 + $0x60] sm:$0xff]
    %v673 = vld [vmem:[%s6 + $0x68] sm:$0xff]
    %v674 = vld [vmem:[%s6 + $0x70] sm:$0xff]
    %v675 = vld [vmem:[%s6 + $0x78] sm:$0xff]
    %677 = vset.pattern.permute.xlu0 0
    %678 = vperm.xlu0 %677, %v660
    %v679 = vpop.permute.xlu0 %678
    %682 = vset.pattern.permute.xlu0 0
    %683 = vperm.xlu0 %682, %v661
    %v684 = vpop.permute.xlu0 %683
    %687 = vset.pattern.permute.xlu0 0
    %688 = vperm.xlu0 %687, %v662
    %v689 = vpop.permute.xlu0 %688
    %692 = vset.pattern.permute.xlu0 0
    %693 = vperm.xlu0 %692, %v663
    %v694 = vpop.permute.xlu0 %693
    %697 = vset.pattern.permute.xlu0 0
    %698 = vperm.xlu0 %697, %v664
    %v699 = vpop.permute.xlu0 %698
    %702 = vset.pattern.permute.xlu0 0
    %703 = vperm.xlu0 %702, %v665
    %v704 = vpop.permute.xlu0 %703
    %707 = vset.pattern.permute.xlu0 0
    %708 = vperm.xlu0 %707, %v666
    %v709 = vpop.permute.xlu0 %708
    %712 = vset.pattern.permute.xlu0 0
    %713 = vperm.xlu0 %712, %v667
    %v714 = vpop.permute.xlu0 %713
    %717 = vset.pattern.permute.xlu0 0
    %718 = vperm.xlu0 %717, %v668
    %v719 = vpop.permute.xlu0 %718
    %722 = vset.pattern.permute.xlu0 0
    %723 = vperm.xlu0 %722, %v669
    %v724 = vpop.permute.xlu0 %723
    %727 = vset.pattern.permute.xlu0 0
    %728 = vperm.xlu0 %727, %v670
    %v729 = vpop.permute.xlu0 %728
    %732 = vset.pattern.permute.xlu0 0
    %733 = vperm.xlu0 %732, %v671
    %v734 = vpop.permute.xlu0 %733
    %737 = vset.pattern.permute.xlu0 0
    %738 = vperm.xlu0 %737, %v672
    %v739 = vpop.permute.xlu0 %738
    %742 = vset.pattern.permute.xlu0 0
    %743 = vperm.xlu0 %742, %v673
    %v744 = vpop.permute.xlu0 %743
    %747 = vset.pattern.permute.xlu0 0
    %748 = vperm.xlu0 %747, %v674
    %v749 = vpop.permute.xlu0 %748
    %752 = vset.pattern.permute.xlu0 0
    %753 = vperm.xlu0 %752, %v675
    %v754 = vpop.permute.xlu0 %753
    %v756 = vmul.f32 %v644, %v679
    %v757 = vmul.f32 %v645, %v684
    %v758 = vmul.f32 %v646, %v689
    %v759 = vmul.f32 %v647, %v694
    %v760 = vmul.f32 %v648, %v699
    %v761 = vmul.f32 %v649, %v704
    %v762 = vmul.f32 %v650, %v709
    %v763 = vmul.f32 %v651, %v714
    %v764 = vmul.f32 %v652, %v719
    %v765 = vmul.f32 %v653, %v724
    %v766 = vmul.f32 %v654, %v729
    %v767 = vmul.f32 %v655, %v734
    %v768 = vmul.f32 %v656, %v739
    %v769 = vmul.f32 %v657, %v744
    %v770 = vmul.f32 %v658, %v749
    %v771 = vmul.f32 %v659, %v754
    %v772 = vadd.f32 %v756, %v757
    %v773 = vadd.f32 %v772, %v758
    %v774 = vadd.f32 %v773, %v759
    %v775 = vadd.f32 %v774, %v760
    %v776 = vadd.f32 %v775, %v761
    %v777 = vadd.f32 %v776, %v762
    %v778 = vadd.f32 %v777, %v763
    %v779 = vadd.f32 %v778, %v764
    %v780 = vadd.f32 %v779, %v765
    %v781 = vadd.f32 %v780, %v766
    %v782 = vadd.f32 %v781, %v767
    %v783 = vadd.f32 %v782, %v768
    %v784 = vadd.f32 %v783, %v769
    %v785 = vadd.f32 %v784, %v770
    %v786 = vadd.f32 %v785, %v771
    %v787 = vrot.slane %v786, 4
    %v788 = vadd.f32 %v786, %v787
    %v789 = vrot.slane %v788, 2
    %v790 = vadd.f32 %v788, %v789
    %v791 = vrot.slane %v790, 1
    %v792 = vadd.f32 %v790, %v791
    %s793 = sld [smem:[#allocation3]]
    %v794 = vstv %s793
    %v795 = vadd.f32 %v792, %v794
    %796 = vst [vmem:[#allocation4] sm:$0x1] %v795
    // Predicated region
    $region34: #{tpu_custom_call.1} parent=1 // pred_check
      _
    $region35: #{tpu_custom_call.1} parent=1 // pred_check_branch
      %798 = sbr.rel (0) target = $region37
    $region36: #{tpu_custom_call.1} parent=1 // pred_region
      %800 = vsyncadd [#allocation5], 0
      %s802 = sshll.u32 [#allocation4], 4
      %s803 = int_to_ptr.vmem [resolvable:$true] %s802
      %s804 = sshll.u32 %s8, 4
      %s805 = int_to_ptr.hbm [resolvable:$true] %s804
      %807 = dma.vmem_to_hbm [thread:$0]  %s803, 16, %s805, [#allocation5]
    $region37: #{tpu_custom_call.1} parent=1 // pred_fallthru
      _
    // Predicated region
    $region38: #{tpu_custom_call.1} parent=1 // pred_check
      _
    $region39: #{tpu_custom_call.1} parent=1 // pred_check_branch
      %809 = sbr.rel (0) target = $region41
    $region40: #{tpu_custom_call.1} parent=1 // pred_region
      %811 = dma.done [#allocation5], 16
    $region41: #{tpu_custom_call.1} parent=1 // pred_fallthru
      _
    %812 = vsyncpa [#allocation5], 1

</llo_original>
